<compile_context>
chip_gen: v5e
topology: v5e:2x2
jax: 0.10.0
libtpu: 0.0.40
codegen_flags: <defaults>
</compile_context>

<pallas_src>
import math

import jax
import jax.numpy as jnp
from jax.experimental import pallas as pl
from jax.experimental.pallas import tpu as pltpu


def _sinusoidal_kernel_split(freqs_ref, time_ref, out_ref):
    # freqs_ref: (1, half) f32   constant across grid steps (VMEM-resident)
    # time_ref : (TB, 1)  f32    batch on sublanes
    # out_ref  : (TB, dim)       embedding axis on lanes; half % 128 == 0 here
    half = freqs_ref.shape[-1]
    # Rank-1 broadcast multiply on the VPU (NOT jnp.dot: a K=1 contraction
    # would get <1% MXU utilization and add result-FIFO pop latency).
    args = time_ref[...] * freqs_ref[...]                       # (TB, half) f32
    # Two lane-aligned half-stores instead of a concatenate: no (TB, dim)
    # intermediate, and the sin half retires while cos is still in flight.
    # TODO(synk): if a v7x bundle dump shows VALU saturation at large B, share
    # the sin/cos range reduction instead of two independent expansions.
    out_ref[:, :half] = jnp.sin(args).astype(out_ref.dtype)
    out_ref[:, half:] = jnp.cos(args).astype(out_ref.dtype)


def _sinusoidal_kernel_concat(freqs_ref, time_ref, out_ref):
    # Fallback when half % 128 != 0: the two half-stores would both become
    # masked mid-vreg partial stores, so emit a single full-width store.
    args = time_ref[...] * freqs_ref[...]
    out_ref[...] = jnp.concatenate(
        [jnp.sin(args), jnp.cos(args)], axis=-1).astype(out_ref.dtype)


def _pick_batch_tile(B: int, dim: int, out_itemsize: int) -> int:
    """Batch tile size:
      - ~4 MiB output tile per buffer (double-buffered ~8 MiB, under v5e's
        16 MiB scoped-VMEM default on all generations),
      - multiple of 8 sublanes whenever tb < B (the (8,128) rule),
      - >= 2 grid steps whenever B >= 16 so ("parallel",) can use both
        v7x TensorCores (harmless no-op on single-TC v5e/v6e)."""
    if B < 16:
        return B                                  # can't give both TCs >= 8 rows
    target_bytes = 4 << 20
    rows = max(8, (target_bytes // max(1, dim * out_itemsize)) // 8 * 8)
    half_b = -(-B // 2)                           # ceil(B/2): force >= 2 tiles
    half_b = -(-half_b // 8) * 8                  # round up to multiple of 8
    return max(8, min(rows, half_b))


def sinusoidal_position_embeddings(time: jax.Array, dim: int,
                                   *, out_dtype=jnp.float32) -> jax.Array:
    """time: (B,) float -> (B, dim) sinusoidal embeddings (PyTorch parity)."""
    assert dim % 2 == 0, "dim must be even"
    half = dim // 2
    assert half > 1, "dim must be >= 4 (PyTorch module divides by half - 1)"
    scale = math.log(10000.0) / (half - 1)

    B = time.shape[0]
    time_col = time.astype(jnp.float32).reshape(B, 1)          # glue reshape
    # freqs computed once in plain JAX; constant index_map -> one DMA, resident.
    freqs = jnp.exp(
        jnp.arange(half, dtype=jnp.float32) * (-scale)
    ).reshape(1, half)

    out_itemsize = jnp.dtype(out_dtype).itemsize
    tb = _pick_batch_tile(B, dim, out_itemsize)
    grid = (pl.cdiv(B, tb),)

    kernel = (_sinusoidal_kernel_split if half % 128 == 0
              else _sinusoidal_kernel_concat)

    cost = pl.CostEstimate(
        flops=B * half,                      # the broadcast multiply
        transcendentals=B * dim,             # sin + cos
        bytes_accessed=B * dim * out_itemsize + B * 4 + half * 4,
    )

    return pl.pallas_call(
        kernel,
        out_shape=jax.ShapeDtypeStruct((B, dim), out_dtype),
        grid_spec=pltpu.PrefetchScalarGridSpec(
            num_scalar_prefetch=0,
            grid=grid,
            in_specs=[
                pl.BlockSpec((1, half), lambda i: (0, 0)),     # freqs, resident
                pl.BlockSpec((tb, 1), lambda i: (i, 0)),       # time tile
            ],
            out_specs=pl.BlockSpec((tb, dim), lambda i: (i, 0)),
        ),
        compiler_params=pltpu.CompilerParams(
            # independent batch tiles -> shard across TCs on v7x
            dimension_semantics=("parallel",),
        ),
        cost_estimate=cost,
    )(freqs, time_col)


def _reference(time: jax.Array, dim: int) -> jax.Array:
    half = dim // 2
    emb = math.log(10000.0) / (half - 1)
    freqs = jnp.exp(jnp.arange(half, dtype=jnp.float32) * -emb)
    args = time.astype(jnp.float32)[:, None] * freqs[None, :]
    return jnp.concatenate([jnp.sin(args), jnp.cos(args)], axis=-1)


if __name__ == "__main__":
    key = jax.random.PRNGKey(0)

    # Main check: half = 128 (lane-aligned half stores), B = 16 -> 2 batch
    # tiles, exercising the pipelined / two-TensorCore path.
    B, DIM = 16, 256
    time = jax.random.uniform(key, (B,), dtype=jnp.float32,
                              minval=0.0, maxval=1000.0)
    out = sinusoidal_position_embeddings(time, DIM)
    out = jax.block_until_ready(out)
    ref = _reference(time, DIM)
    assert out.shape == (B, DIM)
    assert out.dtype == jnp.float32
    assert jnp.allclose(out, ref, atol=1e-5, rtol=1e-5), "mismatch vs reference"

    # Secondary check: half = 32 (not lane-aligned) -> single-store fallback.
    B2, DIM2 = 8, 64
    time2 = jax.random.uniform(jax.random.PRNGKey(1), (B2,), dtype=jnp.float32,
                               minval=0.0, maxval=1000.0)
    out2 = jax.block_until_ready(sinusoidal_position_embeddings(time2, DIM2))
    assert jnp.allclose(out2, _reference(time2, DIM2), atol=1e-5, rtol=1e-5)

    # TODO(synk): at real diffusion sizes (B ~ 8-64 timesteps) fuse this into
    # the consuming timestep-MLP kernel; a standalone call is launch/DMA bound.

    print("KERNEL_OK")
</pallas_src>

<mosaic_0001>
module attributes {stable_mosaic.version = 11 : i64} {
  func.func @_sinusoidal_kernel_split(%arg0: i32, %arg1: memref<1x128xf32, #tpu.memory_space<vmem>>, %arg2: memref<8x1xf32, #tpu.memory_space<vmem>>, %arg3: memref<8x256xf32, #tpu.memory_space<vmem>>) attributes {dimension_semantics = [#tpu.dimension_semantics<parallel>], iteration_bounds = array<i64: 2>, scalar_prefetch = 0 : i64, scratch_operands = 0 : i64, tpu.core_type = #tpu.core_type<tc>, window_params = [{pipeline_mode = #tpu.pipeline_mode<synchronous>, transform_indices = @transform_0, window_bounds = array<i64: 1, 128>}, {transform_indices = @transform_1, window_bounds = array<i64: 8, 1>}, {transform_indices = @transform_2, window_bounds = array<i64: 8, 256>}]} {
    %c0 = arith.constant 0 : index
    %c0_0 = arith.constant 0 : index
    %0 = vector.load %arg2[%c0, %c0_0] : memref<8x1xf32, #tpu.memory_space<vmem>>, vector<8x1xf32>
    %c0_1 = arith.constant 0 : index
    %c0_2 = arith.constant 0 : index
    %1 = vector.load %arg1[%c0_1, %c0_2] : memref<1x128xf32, #tpu.memory_space<vmem>>, vector<1x128xf32>
    %2 = vector.broadcast %0 : vector<8x1xf32> to vector<8x128xf32>
    %3 = vector.broadcast %1 : vector<1x128xf32> to vector<8x128xf32>
    %4 = arith.mulf %2, %3 : vector<8x128xf32>
    %5 = math.sin %4 : vector<8x128xf32>
    %c0_3 = arith.constant 0 : index
    %c0_4 = arith.constant 0 : index
    %6 = vector.load %arg3[%c0_3, %c0_4] : memref<8x256xf32, #tpu.memory_space<vmem>>, vector<8x128xf32>
    tpu.vector_store %arg3[%c0_3, %c0_4], %5 {strides = array<i32>} : memref<8x256xf32, #tpu.memory_space<vmem>>, vector<8x128xf32>,
    %7 = math.cos %4 : vector<8x128xf32>
    %c0_5 = arith.constant 0 : index
    %c128 = arith.constant 128 : index
    %8 = vector.load %arg3[%c0_5, %c128] : memref<8x256xf32, #tpu.memory_space<vmem>>, vector<8x128xf32>
    tpu.vector_store %arg3[%c0_5, %c128], %7 {strides = array<i32>} : memref<8x256xf32, #tpu.memory_space<vmem>>, vector<8x128xf32>,
    return
  }
  func.func @transform_0(%arg0: i32) -> (i32, i32) {
    %c0_i32 = arith.constant 0 : i32
    %c0_i32_0 = arith.constant 0 : i32
    %c0_i32_1 = arith.constant 0 : i32
    return %c0_i32, %c0_i32_0 : i32, i32
  }
  func.func @transform_1(%arg0: i32) -> (i32, i32) {
    %c0_i32 = arith.constant 0 : i32
    %c0_i32_0 = arith.constant 0 : i32
    return %arg0, %c0_i32 : i32, i32
  }
  func.func @transform_2(%arg0: i32) -> (i32, i32) {
    %c0_i32 = arith.constant 0 : i32
    %c0_i32_0 = arith.constant 0 : i32
    return %arg0, %c0_i32 : i32, i32
  }
}

</mosaic_0001>

<llo_original>
// kernel: tpu_custom_call.1
$region0: #{tpu_custom_call.1}
  #allocation0 [shape = 'u32[]', space=smem, size = 0x4, offset = 0x4, fixed_abs, tag = 'smem constant byte address 0x4 - core index']
  #allocation1 [shape = 'u32[72,128]{1,0:T(1,128)}', space=vmem, size = 0x9000, scoped, tag = 'internal scratch']
  %s0 = inlined_call_operand.vmem [shape: f32[1,128], index: 0, kind: input, shape index: {}]
  %s1 = inlined_call_operand.vmem [shape: f32[16,1], index: 1, kind: input, shape index: {}]
  %s2 = inlined_call_operand.hbm [shape: f32[16,256], index: 2, kind: output, shape index: {}]
  %s3 = sld [smem:[#allocation0]]
  $region41: #{tpu_custom_call.1} parent=0
    _
  %s5 = ssub.s32 1, %s3
  %s6 = scalar_select 0, %s5, %s3
  $region1: #{tpu_custom_call.1} parent=0
    #allocation2 [shape = 'u8[16384]{0}', space=vmem, size = 0x4000, scoped, tag = 'output window, operand 0']
    #allocation3 [shape = 's32[2]{0}', space=sflag, size = 0x8, scoped, tag = 'scoped memory for tpu_custom_call.1']
    %7 = vsyncpa [#allocation3], 0
    %s8 = scalar_lea.sflag [#allocation3], 1
    %9 = vsyncpa %s8, 0
    loop: start=0, step=1, limit=4
    $region2: #{tpu_custom_call.1} parent=1 // loop_pre_header
      _
    $region3: #{tpu_custom_call.1} parent=1 // loop_header
      %s11 = sphi 0, %s15
      %p12 = scmp.ge.s32.totalorder %s11, 4
      %s19 = sphi 0, %s19
      %s21 = sphi 0, %s19
      %s22 = sphi 0, %s21
      %s36 = sphi 0, %s22
      %s42 = sphi 0, %s44
      %s45 = sphi 0, %s42
      %s46 = sphi 0, %s45
      %s62 = sphi 0, %s46
      %s68 = sphi 0, %s70
      %s71 = sphi 0, %s68
      %s72 = sphi 0, %s71
      %s88 = sphi 0, %s72
    $region4: #{tpu_custom_call.1} parent=1 // loop_header_branch
      %14 = sbr.rel (%p12) target = $region8
    $region5: #{tpu_custom_call.1} parent=1 // loop_body
      %s16 = ssub.s32 %s11, 1
      %s17 = ssub.s32 %s11, 2
      %s18 = sadd.s32 %s11, 1
      %s20 = sadd.s32 %s19, 1
      %p23 = scmp.eq.s32.totalorder %s11, 1
      %p24 = scmp.ne.s32.totalorder %s19, %s21
      %p25 = scmp.eq.s32.totalorder %s11, 0
      %p26 = por %p24, %p25
      %p27 = scmp.ne.s32.totalorder %s19, %s21
      %p28 = scmp.eq.s32.totalorder %s16, 1
      %p29 = por %p27, %p28
      %p30 = scmp.ne.s32.totalorder %s21, %s22
      %p31 = scmp.eq.s32.totalorder %s16, 0
      %p32 = por %p30, %p31
      %p33 = scmp.ne.s32.totalorder %s21, %s22
      %p34 = scmp.eq.s32.totalorder %s17, 1
      %p35 = por %p33, %p34
      %p37 = scmp.ne.s32.totalorder %s22, %s36
      %p38 = scmp.eq.s32.totalorder %s17, 0
      %p39 = por %p37, %p38
      %s40 = ssub.s32 %s11, %s18
      %p41 = scmp.eq.s32.totalorder %s40, 0
      %s43 = sadd.s32 %s42, 1
      %s44 = scalar_select %p41, %s42, %s43
      %p47 = pneg %p41
      %p48 = scmp.eq.s32.totalorder %s11, 1
      %p49 = por %p47, %p48
      %p50 = scmp.ne.s32.totalorder %s42, %s45
      %p51 = scmp.eq.s32.totalorder %s11, 0
      %p52 = por %p50, %p51
      %p53 = scmp.ne.s32.totalorder %s42, %s45
      %p54 = scmp.eq.s32.totalorder %s16, 1
      %p55 = por %p53, %p54
      %p56 = scmp.ne.s32.totalorder %s45, %s46
      %p57 = scmp.eq.s32.totalorder %s16, 0
      %p58 = por %p56, %p57
      %p59 = scmp.ne.s32.totalorder %s45, %s46
      %p60 = scmp.eq.s32.totalorder %s17, 1
      %p61 = por %p59, %p60
      %p63 = scmp.ne.s32.totalorder %s46, %s62
      %p64 = scmp.eq.s32.totalorder %s17, 0
      %p65 = por %p63, %p64
      %s66 = ssub.s32 %s11, %s18
      %p67 = scmp.eq.s32.totalorder %s66, 0
      %s69 = sadd.s32 %s68, 1
      %s70 = scalar_select %p67, %s68, %s69
      %p73 = pneg %p67
      %p74 = scmp.eq.s32.totalorder %s11, 1
      %p75 = por %p73, %p74
      %p76 = scmp.ne.s32.totalorder %s68, %s71
      %p77 = scmp.eq.s32.totalorder %s11, 0
      %p78 = por %p76, %p77
      %p79 = scmp.ne.s32.totalorder %s68, %s71
      %p80 = scmp.eq.s32.totalorder %s16, 1
      %p81 = por %p79, %p80
      %p82 = scmp.ne.s32.totalorder %s71, %s72
      %p83 = scmp.eq.s32.totalorder %s16, 0
      %p84 = por %p82, %p83
      %p85 = scmp.ne.s32.totalorder %s71, %s72
      %p86 = scmp.eq.s32.totalorder %s17, 1
      %p87 = por %p85, %p86
      %p89 = scmp.ne.s32.totalorder %s72, %s88
      %p90 = scmp.eq.s32.totalorder %s17, 0
      %p91 = por %p89, %p90
      %p92 = scmp.le.s32.totalorder 1, %s11
      %p93 = scmp.lt.s32.totalorder %s11, 3
      %p94 = pnand %p92, %p93
      %p95 = pneg %p94
      // Predicated region
      $region9: #{tpu_custom_call.1} parent=5 // pred_check
        _
      $region10: #{tpu_custom_call.1} parent=5 // pred_check_branch
        %97 = sbr.rel (%p94) target = $region12
      $region11: #{tpu_custom_call.1} parent=5 // pred_region
        %s98 = ssub.s32 %s11, 1
        // Predicated region
        $region13: #{tpu_custom_call.1} parent=11 // pred_check
          %p99 = pneg %p32
        $region14: #{tpu_custom_call.1} parent=11 // pred_check_branch
          %101 = sbr.rel (%p99) target = $region16
        $region15: #{tpu_custom_call.1} parent=11 // pred_region
          _
        $region16: #{tpu_custom_call.1} parent=11 // pred_fallthru
          _
      $region12: #{tpu_custom_call.1} parent=5 // pred_fallthru
        _
      %p102 = scmp.lt.s32.totalorder %s11, 2
      // Predicated region
      $region17: #{tpu_custom_call.1} parent=5 // pred_check
        %p103 = pneg %p102
      $region18: #{tpu_custom_call.1} parent=5 // pred_check_branch
        %105 = sbr.rel (%p103) target = $region20
      $region19: #{tpu_custom_call.1} parent=5 // pred_region
        // Predicated region
        $region21: #{tpu_custom_call.1} parent=19 // pred_check
          %p106 = pneg %p52
        $region22: #{tpu_custom_call.1} parent=19 // pred_check_branch
          %108 = sbr.rel (%p106) target = $region24
        $region23: #{tpu_custom_call.1} parent=19 // pred_region
          %p109 = scmp.lt.s32.totalorder %s11, 1
          %s110 = scalar_select %p109, %s11, 1
          %s111 = smul.addr %s110, 8
          %s112 = scalar_lea.vmem %s1, %s111
        $region24: #{tpu_custom_call.1} parent=19 // pred_fallthru
          _
      $region20: #{tpu_custom_call.1} parent=5 // pred_fallthru
        _
      %p113 = scmp.le.s32.totalorder 1, %s11
      %p114 = scmp.lt.s32.totalorder %s11, 3
      %p115 = pnand %p113, %p114
      %p116 = pneg %p115
      // Predicated region
      $region25: #{tpu_custom_call.1} parent=5 // pred_check
        _
      $region26: #{tpu_custom_call.1} parent=5 // pred_check_branch
        %118 = sbr.rel (%p115) target = $region28
      $region27: #{tpu_custom_call.1} parent=5 // pred_region
        %s119 = ssub.s32 %s11, 1
        %p120 = pneg %p32
        %p121 = pneg %p29
        %p122 = scmp.lt.s32.totalorder %s16, 1
        %s123 = scalar_select %p122, %s16, 1
        %s124 = smul.addr %s123, 8
        %s125 = scalar_lea.vmem %s1, %s124
        %p126 = pneg %p58
        %p127 = pneg %p55
        %p128 = pneg %p84
        %p129 = pneg %p81
        %s130 = sand.u32 %s71, 1
        %s131 = scalar_lea.sflag [#allocation3], %s130
        %s132 = sand.u32 %s71, 1
        %s133 = smul.addr %s132, 16
        %s134 = scalar_lea.vmem [#allocation2], %s133
        %p135 = scmp.lt.s32.totalorder %s16, 1
        %s136 = scalar_select %p135, %s16, 1
        %s137 = smul.addr %s136, 8
        %s138 = scalar_lea.vmem %s1, %s137
        %v139 = vld [vmem:[%s138] sm:$0xff]
        %v140 = vld [vmem:[%s0] sm:$0x1]
        %142 = vset.pattern.permute.xlu0 0
        %143 = vperm.xlu0 %142, %v139
        %v144 = vpop.permute.xlu0 %143
        %v147 = vperm.slane %v140, 0
        %v149 = vmul.f32 %v144, %v147
        %v150 = vand.u32 2147483647, %v149
        %vm151 = vcmp.le.f32.partialorder %v150, 0.7853982
        %vm152 = vcmp.lt.s32.totalorder %v149, 0
        %v153 = vand.u32 %v149, 2139095040
        %v154 = vshrl.u32 %v153, 23
        %v155 = vsub.s32 %v154, 127
        %v156 = vand.u32 2147483647, %v149
        %v157 = vand.u32 %v156, 8388607
        %v158 = vor.u32 %v157, 8388608
        %v159 = vsub.s32 0, %v158
        %v160 = vadd.s32 %v155, 1
        %vm161 = vcmp.gt.s32.totalorder %v160, 0
        %v162 = vsel %vm161, %v160, 0
        %v163 = vshrl.u32 %v162, 5
        %v164 = vand.u32 %v162, 31
        %v165 = vsub.s32 32, %v164
        %v166 = vshrl.u32 683565275, %v165
        %v167 = vshll.u32 683565275, %v164
        %v168 = vshrl.u32 2475754826, %v165
        %v169 = vor.u32 %v167, %v168
        %v170 = vshll.u32 2475754826, %v164
        %v171 = vshrl.u32 2131351028, %v165
        %v172 = vor.u32 %v170, %v171
        %v173 = vshll.u32 2131351028, %v164
        %v174 = vshrl.u32 2102212464, %v165
        %v175 = vor.u32 %v173, %v174
        %v176 = vshll.u32 2102212464, %v164
        %v177 = vshrl.u32 920167782, %v165
        %v178 = vor.u32 %v176, %v177
        %v179 = vshll.u32 920167782, %v164
        %v180 = vshrl.u32 1326507024, %v165
        %v181 = vor.u32 %v179, %v180
        %vm182 = vcmp.lt.s32.totalorder %v163, 1
        %vm183 = vcmp.lt.s32.totalorder %v163, 2
        %vm184 = vcmp.lt.s32.totalorder %v163, 3
        %vm185 = vcmp.lt.s32.totalorder %v163, 4
        %v186 = vsel %vm182, %v166, %v169
        %v187 = vsel %vm185, %v175, 2102212464
        %v188 = vsel %vm184, %v172, %v187
        %v189 = vsel %vm183, %v186, %v188
        %v190 = vsel %vm182, %v169, %v172
        %v191 = vsel %vm185, %v178, 920167782
        %v192 = vsel %vm184, %v175, %v191
        %v193 = vsel %vm183, %v190, %v192
        %v194 = vsel %vm182, %v172, %v175
        %v195 = vsel %vm185, %v181, 1326507024
        %v196 = vsel %vm184, %v178, %v195
        %v197 = vsel %vm183, %v194, %v196
        %v198 = vshll.u32 %v158, 8
        %v199 = vand.u32 %v198, 65535
        %v200 = vshrl.u32 %v198, 16
        %v201 = vand.u32 %v197, 65535
        %v202 = vshrl.u32 %v197, 16
        %v203 = vmul.u32 %v199, %v201
        %v204 = vmul.u32 %v199, %v202
        %v205 = vmul.u32 %v200, %v201
        %v206 = vmul.u32 %v200, %v202
        %v207 = vshll.u32 %v204, 16
        %v208 = vshrl.u32 %v204, 16
        %v209 = vshll.u32 %v205, 16
        %v210 = vshrl.u32 %v205, 16
        %vm211 = vc.u32 %v203, %v207
        %v212 = vsel %vm211, 1, 0
        %v213 = vadd.s32 %v203, %v207
        %v214 = vadd.s32 %v206, %v212
        %vm215 = vc.u32 %v213, %v209
        %v216 = vsel %vm215, 1, 0
        %v217 = vadd.s32 %v213, %v209
        %v218 = vadd.s32 %v214, %v216
        %v219 = vadd.s32 %v218, %v208
        %v220 = vadd.s32 %v219, %v210
        %v221 = vand.u32 %v198, 65535
        %v222 = vshrl.u32 %v198, 16
        %v223 = vand.u32 %v193, 65535
        %v224 = vshrl.u32 %v193, 16
        %v225 = vmul.u32 %v221, %v223
        %v226 = vmul.u32 %v221, %v224
        %v227 = vmul.u32 %v222, %v223
        %v228 = vmul.u32 %v222, %v224
        %v229 = vshll.u32 %v226, 16
        %v230 = vshrl.u32 %v226, 16
        %v231 = vshll.u32 %v227, 16
        %v232 = vshrl.u32 %v227, 16
        %vm233 = vc.u32 %v225, %v229
        %v234 = vsel %vm233, 1, 0
        %v235 = vadd.s32 %v225, %v229
        %v236 = vadd.s32 %v228, %v234
        %vm237 = vc.u32 %v235, %v231
        %v238 = vsel %vm237, 1, 0
        %v239 = vadd.s32 %v235, %v231
        %v240 = vadd.s32 %v236, %v238
        %v241 = vadd.s32 %v240, %v230
        %v242 = vadd.s32 %v241, %v232
        %v243 = vmul.u32 %v198, %v189
        %v244 = vadd.s32 %v220, %v239
        %vm245 = vc.u32 %v220, %v239
        %v246 = vadd.s32 %v242, 1
        %v247 = vsel %vm245, %v246, %v242
        %v248 = vadd.s32 %v243, %v247
        %v249 = vadd.s32 %v248, 536870912
        %v250 = vshrl.u32 %v249, 30
        %v251 = vshll.u32 %v250, 30
        %v252 = vsub.s32 %v248, %v251
        %vm253 = vcmp.lt.s32.totalorder %v252, 0
        %v254 = vsub.s32 0, %v252
        %v255 = vsel %vm253, %v254, %v252
        %v256 = vclz %v255
        %v257 = vsub.s32 %v256, 2
        %vm258 = vcmp.gt.s32.totalorder 0, %v257
        %v259 = vsel %vm258, 0, %v257
        %v260 = vsub.s32 32, %v259
        %v261 = vshll.u32 %v252, %v259
        %v262 = vshrl.u32 %v244, %v260
        %v263 = vor.u32 %v261, %v262
        %v264 = vsub.s32 4294967266, %v259
        %v265 = vadd.s32 %v264, 127
        %v266 = vshll.u32 %v265, 23
        %v267 = vor.u32 4788187, %v266
        %v268 = vand.u32 2147483647, %v267
        %v270 = vcvt.s32.f32 %v263
        %v271 = vmul.f32 %v270, %v268
        %v272 = vxor.u32 %v271, 2147483648
        %v273 = vsel %vm152, %v272, %v271
        %v274 = vsub.s32 4, %v250
        %v275 = vsel %vm152, %v274, %v250
        %v276 = vsel %vm151, %v149, %v273
        %v277 = vsel %vm151, 0, %v275
        %v278 = vmul.f32 %v276, %v276
        %v279 = vmul.f32 %v278, -0.001358992
        %v280 = vadd.f32 %v279, 0.041655596
        %v281 = vmul.f32 %v278, %v280
        %v282 = vadd.f32 %v281, -0.4999988
        %v283 = vmul.f32 %v278, %v282
        %v284 = vadd.f32 1.0, %v283
        %v285 = vmul.f32 %v276, %v276
        %v286 = vmul.f32 %v285, -0.00019511016
        %v287 = vadd.f32 %v286, 0.008332121
        %v288 = vmul.f32 %v285, %v287
        %v289 = vadd.f32 %v288, -0.16666654
        %v290 = vmul.f32 %v285, %v289
        %v291 = vadd.f32 %v290, 1.0
        %v292 = vmul.f32 %v291, %v276
        %vm293 = vweird.f32 %v149
        %v294 = vadd.s32 %v277, 3
        %v295 = vand.u32 %v294, 3
        %vm296 = vcmp.lt.s32.totalorder %v295, 2
        %vm297 = vcmp.eq.s32.totalorder %v295, 0
        %v298 = vxor.u32 %v292, 2147483648
        %v299 = vsel %vm297, %v284, %v298
        %vm300 = vcmp.eq.s32.totalorder %v295, 2
        %v301 = vxor.u32 %v284, 2147483648
        %v302 = vsel %vm300, %v301, %v292
        %v303 = vsel %vm296, %v299, %v302
        %v304 = vsel %vm293, nan, %v303
        %305 = vst [vmem:[%s134] sm:$0xff] %v304
        %v306 = vand.u32 2147483647, %v149
        %vm307 = vcmp.le.f32.partialorder %v306, 0.7853982
        %vm308 = vcmp.lt.s32.totalorder %v149, 0
        %v309 = vand.u32 %v149, 2139095040
        %v310 = vshrl.u32 %v309, 23
        %v311 = vsub.s32 %v310, 127
        %v312 = vand.u32 2147483647, %v149
        %v313 = vand.u32 %v312, 8388607
        %v314 = vor.u32 %v313, 8388608
        %v315 = vsub.s32 0, %v314
        %v316 = vadd.s32 %v311, 1
        %vm317 = vcmp.gt.s32.totalorder %v316, 0
        %v318 = vsel %vm317, %v316, 0
        %v319 = vshrl.u32 %v318, 5
        %v320 = vand.u32 %v318, 31
        %v321 = vsub.s32 32, %v320
        %v322 = vshrl.u32 683565275, %v321
        %v323 = vshll.u32 683565275, %v320
        %v324 = vshrl.u32 2475754826, %v321
        %v325 = vor.u32 %v323, %v324
        %v326 = vshll.u32 2475754826, %v320
        %v327 = vshrl.u32 2131351028, %v321
        %v328 = vor.u32 %v326, %v327
        %v329 = vshll.u32 2131351028, %v320
        %v330 = vshrl.u32 2102212464, %v321
        %v331 = vor.u32 %v329, %v330
        %v332 = vshll.u32 2102212464, %v320
        %v333 = vshrl.u32 920167782, %v321
        %v334 = vor.u32 %v332, %v333
        %v335 = vshll.u32 920167782, %v320
        %v336 = vshrl.u32 1326507024, %v321
        %v337 = vor.u32 %v335, %v336
        %vm338 = vcmp.lt.s32.totalorder %v319, 1
        %vm339 = vcmp.lt.s32.totalorder %v319, 2
        %vm340 = vcmp.lt.s32.totalorder %v319, 3
        %vm341 = vcmp.lt.s32.totalorder %v319, 4
        %v342 = vsel %vm338, %v322, %v325
        %v343 = vsel %vm341, %v331, 2102212464
        %v344 = vsel %vm340, %v328, %v343
        %v345 = vsel %vm339, %v342, %v344
        %v346 = vsel %vm338, %v325, %v328
        %v347 = vsel %vm341, %v334, 920167782
        %v348 = vsel %vm340, %v331, %v347
        %v349 = vsel %vm339, %v346, %v348
        %v350 = vsel %vm338, %v328, %v331
        %v351 = vsel %vm341, %v337, 1326507024
        %v352 = vsel %vm340, %v334, %v351
        %v353 = vsel %vm339, %v350, %v352
        %v354 = vshll.u32 %v314, 8
        %v355 = vand.u32 %v354, 65535
        %v356 = vshrl.u32 %v354, 16
        %v357 = vand.u32 %v353, 65535
        %v358 = vshrl.u32 %v353, 16
        %v359 = vmul.u32 %v355, %v357
        %v360 = vmul.u32 %v355, %v358
        %v361 = vmul.u32 %v356, %v357
        %v362 = vmul.u32 %v356, %v358
        %v363 = vshll.u32 %v360, 16
        %v364 = vshrl.u32 %v360, 16
        %v365 = vshll.u32 %v361, 16
        %v366 = vshrl.u32 %v361, 16
        %vm367 = vc.u32 %v359, %v363
        %v368 = vsel %vm367, 1, 0
        %v369 = vadd.s32 %v359, %v363
        %v370 = vadd.s32 %v362, %v368
        %vm371 = vc.u32 %v369, %v365
        %v372 = vsel %vm371, 1, 0
        %v373 = vadd.s32 %v369, %v365
        %v374 = vadd.s32 %v370, %v372
        %v375 = vadd.s32 %v374, %v364
        %v376 = vadd.s32 %v375, %v366
        %v377 = vand.u32 %v354, 65535
        %v378 = vshrl.u32 %v354, 16
        %v379 = vand.u32 %v349, 65535
        %v380 = vshrl.u32 %v349, 16
        %v381 = vmul.u32 %v377, %v379
        %v382 = vmul.u32 %v377, %v380
        %v383 = vmul.u32 %v378, %v379
        %v384 = vmul.u32 %v378, %v380
        %v385 = vshll.u32 %v382, 16
        %v386 = vshrl.u32 %v382, 16
        %v387 = vshll.u32 %v383, 16
        %v388 = vshrl.u32 %v383, 16
        %vm389 = vc.u32 %v381, %v385
        %v390 = vsel %vm389, 1, 0
        %v391 = vadd.s32 %v381, %v385
        %v392 = vadd.s32 %v384, %v390
        %vm393 = vc.u32 %v391, %v387
        %v394 = vsel %vm393, 1, 0
        %v395 = vadd.s32 %v391, %v387
        %v396 = vadd.s32 %v392, %v394
        %v397 = vadd.s32 %v396, %v386
        %v398 = vadd.s32 %v397, %v388
        %v399 = vmul.u32 %v354, %v345
        %v400 = vadd.s32 %v376, %v395
        %vm401 = vc.u32 %v376, %v395
        %v402 = vadd.s32 %v398, 1
        %v403 = vsel %vm401, %v402, %v398
        %v404 = vadd.s32 %v399, %v403
        %v405 = vadd.s32 %v404, 536870912
        %v406 = vshrl.u32 %v405, 30
        %v407 = vshll.u32 %v406, 30
        %v408 = vsub.s32 %v404, %v407
        %vm409 = vcmp.lt.s32.totalorder %v408, 0
        %v410 = vsub.s32 0, %v408
        %v411 = vsel %vm409, %v410, %v408
        %v412 = vclz %v411
        %v413 = vsub.s32 %v412, 2
        %vm414 = vcmp.gt.s32.totalorder 0, %v413
        %v415 = vsel %vm414, 0, %v413
        %v416 = vsub.s32 32, %v415
        %v417 = vshll.u32 %v408, %v415
        %v418 = vshrl.u32 %v400, %v416
        %v419 = vor.u32 %v417, %v418
        %v420 = vsub.s32 4294967266, %v415
        %v421 = vadd.s32 %v420, 127
        %v422 = vshll.u32 %v421, 23
        %v423 = vor.u32 4788187, %v422
        %v424 = vand.u32 2147483647, %v423
        %v426 = vcvt.s32.f32 %v419
        %v427 = vmul.f32 %v426, %v424
        %v428 = vxor.u32 %v427, 2147483648
        %v429 = vsel %vm308, %v428, %v427
        %v430 = vsub.s32 4, %v406
        %v431 = vsel %vm308, %v430, %v406
        %v432 = vsel %vm307, %v149, %v429
        %v433 = vsel %vm307, 0, %v431
        %v434 = vmul.f32 %v432, %v432
        %v435 = vmul.f32 %v434, -0.001358992
        %v436 = vadd.f32 %v435, 0.041655596
        %v437 = vmul.f32 %v434, %v436
        %v438 = vadd.f32 %v437, -0.4999988
        %v439 = vmul.f32 %v434, %v438
        %v440 = vadd.f32 1.0, %v439
        %v441 = vmul.f32 %v432, %v432
        %v442 = vmul.f32 %v441, -0.00019511016
        %v443 = vadd.f32 %v442, 0.008332121
        %v444 = vmul.f32 %v441, %v443
        %v445 = vadd.f32 %v444, -0.16666654
        %v446 = vmul.f32 %v441, %v445
        %v447 = vadd.f32 %v446, 1.0
        %v448 = vmul.f32 %v447, %v432
        %vm449 = vweird.f32 %v149
        %v450 = vand.u32 %v433, 3
        %vm451 = vcmp.lt.s32.totalorder %v450, 2
        %vm452 = vcmp.eq.s32.totalorder %v450, 0
        %v453 = vxor.u32 %v448, 2147483648
        %v454 = vsel %vm452, %v440, %v453
        %vm455 = vcmp.eq.s32.totalorder %v450, 2
        %v456 = vxor.u32 %v440, 2147483648
        %v457 = vsel %vm455, %v456, %v448
        %v458 = vsel %vm451, %v454, %v457
        %v459 = vsel %vm449, nan, %v458
        %460 = vst [vmem:[%s134 + $0x8] sm:$0xff] %v459
        %s461 = sand.u32 %s71, 1
        %s462 = scalar_lea.sflag [#allocation3], %s461
        %s463 = sand.u32 %s71, 1
        %s464 = smul.addr %s463, 16
        %s465 = scalar_lea.vmem [#allocation2], %s464
        // Predicated region
        $region29: #{tpu_custom_call.1} parent=27 // pred_check
          %p466 = pneg %p81
        $region30: #{tpu_custom_call.1} parent=27 // pred_check_branch
          %468 = sbr.rel (%p466) target = $region32
        $region31: #{tpu_custom_call.1} parent=27 // pred_region
          %470 = vsyncadd %s462, 0
          %s471 = smul.addr %s16, 2
          %s472 = smul.addr %s471, 8
          %s473 = scalar_lea.hbm %s2, %s472
          %s475 = sshll.u32 %s465, 4
          %s476 = int_to_ptr.vmem [resolvable:$true] %s475
          %s477 = sshll.u32 %s473, 4
          %s478 = int_to_ptr.hbm [resolvable:$true] %s477
          %480 = dma.vmem_to_hbm [thread:$0]  %s476, 256, %s478, %s462
        $region32: #{tpu_custom_call.1} parent=27 // pred_fallthru
          _
      $region28: #{tpu_custom_call.1} parent=5 // pred_fallthru
        _
      %p481 = scmp.le.s32.totalorder 2, %s11
      // Predicated region
      $region33: #{tpu_custom_call.1} parent=5 // pred_check
        %p482 = pneg %p481
      $region34: #{tpu_custom_call.1} parent=5 // pred_check_branch
        %484 = sbr.rel (%p482) target = $region36
      $region35: #{tpu_custom_call.1} parent=5 // pred_region
        %s485 = ssub.s32 %s11, 2
        // Predicated region
        $region37: #{tpu_custom_call.1} parent=35 // pred_check
          %p486 = pneg %p87
        $region38: #{tpu_custom_call.1} parent=35 // pred_check_branch
          %488 = sbr.rel (%p486) target = $region40
        $region39: #{tpu_custom_call.1} parent=35 // pred_region
          %s489 = sand.u32 %s72, 1
          %s490 = scalar_lea.sflag [#allocation3], %s489
          %s491 = sand.u32 %s72, 1
          %s492 = smul.addr %s491, 16
          %s493 = scalar_lea.vmem [#allocation2], %s492
          %495 = dma.done %s490, 256
        $region40: #{tpu_custom_call.1} parent=35 // pred_fallthru
          _
      $region36: #{tpu_custom_call.1} parent=5 // pred_fallthru
        _
    $region6: #{tpu_custom_call.1} parent=1 // loop_footer
      %s15 = sadd.s32 1, %s11
    $region7: #{tpu_custom_call.1} parent=1 // loop_footer_branch
      %10 = sbr.rel target = $region3
    $region8: #{tpu_custom_call.1} parent=1 // loop_exit
      _
    %496 = vsyncpa [#allocation3], 1
    %s497 = scalar_lea.sflag [#allocation3], 1
    %498 = vsyncpa %s497, 1

</llo_original>
